<compile_context>
chip_gen: v6e
topology: v6e:2x2x1
jax: 0.10.0
libtpu: 0.0.40
codegen_flags: <defaults>
</compile_context>

<pallas_src>
import functools

import jax
import jax.numpy as jnp
from jax.experimental import pallas as pl
from jax.experimental.pallas import tpu as pltpu


def _pos_embed_kernel(col_t_ref, row_t_ref, o_ref, *, n_col_chunks):
    """Writes one (Bb, Cc, H*W) output block.

    col_t_ref: (D, W)  column embeddings, channel-major (VMEM-resident).
    row_t_ref: (D, H)  row embeddings, channel-major (VMEM-resident).
    o_ref:     (Bb, Cc, H*W)  output block; the current channel chunk lies
               entirely in the col half (ci < n_col_chunks) or the row half.
    """
    Bb, Cc, _ = o_ref.shape
    W = col_t_ref.shape[1]
    H = row_t_ref.shape[1]
    ci = pl.program_id(1)

    @pl.when(ci < n_col_chunks)
    def _col_half():
        off = pl.multiple_of(ci * Cc, Cc)
        sub = col_t_ref[pl.ds(off, Cc), :]                       # (Cc, W)
        # value at (c, h*W + w) == sub[c, w]  -> tile the W block H times.
        plane = jnp.concatenate([sub] * H, axis=1)               # (Cc, H*W)
        plane = plane.astype(o_ref.dtype)
        for b in range(Bb):                                      # batch-invariant
            o_ref[b, :, :] = plane                               # dense store

    @pl.when(ci >= n_col_chunks)
    def _row_half():
        off = pl.multiple_of((ci - n_col_chunks) * Cc, Cc)
        sub = row_t_ref[pl.ds(off, Cc), :]                       # (Cc, H)
        # value at (c, h*W + w) == sub[c, h]  -> repeat each column W times.
        plane = jnp.concatenate(
            [jnp.broadcast_to(sub[:, h:h + 1], (Cc, W)) for h in range(H)],
            axis=1)                                              # (Cc, H*W)
        plane = plane.astype(o_ref.dtype)
        for b in range(Bb):
            o_ref[b, :, :] = plane


def _pick_blocks(B, D, HW, out_itemsize, budget_bytes):
    """Largest (Bb, Cc) with Bb | B, Cc | D, Cc % 8 == 0 fitting the budget."""
    chan_divs = [c for c in range(8, D + 1, 8) if D % c == 0]
    assert chan_divs, "num_pos_feats must be a multiple of 8"
    bb = B
    while True:
        best_cc = None
        for cc in chan_divs:                     # ascending; keep largest fit
            need = (2 * bb * cc * HW + 2 * cc * HW) * out_itemsize
            if need <= budget_bytes:
                best_cc = cc
        if best_cc is not None:
            return bb, best_cc
        if bb == 1:                              # give up: smallest blocks
            return 1, chan_divs[0]
        bb -= 1
        while B % bb != 0:
            bb -= 1


def position_embedding_learned(x, row_weight, col_weight, *, out_dtype=None):
    """JAX/Pallas equivalent of PositionEmbeddingLearned.forward(x)."""
    B = x.shape[0]
    H, W = x.shape[-2], x.shape[-1]
    D = row_weight.shape[-1]
    assert col_weight.shape[-1] == D
    assert H <= row_weight.shape[0] and W <= col_weight.shape[0]
    # TODO(synk): channel chunking assumes num_pos_feats % 8 == 0 (true for all
    # practical configs, incl. the default 256); other values are unsupported.
    assert D % 8 == 0 and D >= 8

    HW = H * W
    table_dtype = row_weight.dtype
    out_dtype = table_dtype if out_dtype is None else jnp.dtype(out_dtype)
    out_isz = jnp.dtype(out_dtype).itemsize
    tbl_isz = jnp.dtype(table_dtype).itemsize

    # Embedding "gather" with arange indices == static slice; pre-transpose the
    # tiny tables to channel-major in XLA so the kernel only slices/broadcasts.
    col_t = col_weight[:W].T                                     # (D, W)
    row_t = row_weight[:H].T                                     # (D, H)

    # Generation-aware VMEM budget: v5e/v6e have 128 MiB, v7x only 64 MiB.
    try:
        vmem_cap = int(pltpu.get_tpu_info().vmem_capacity_bytes)
    except Exception:
        vmem_cap = 64 << 20                                      # v7x-safe fallback
    budget = max(8 << 20, int(0.35 * vmem_cap))

    Bb, Cc = _pick_blocks(B, D, HW, out_isz, budget)
    n_col_chunks = D // Cc
    grid = (B // Bb, 2 * D // Cc)                                # >= 2 channel steps

    # Real per-step demand: double-buffered output block + one slab of
    # construction intermediates + the resident tables, plus slack.
    demand = (2 * Bb * Cc * HW * out_isz
              + 2 * Cc * HW * max(out_isz, tbl_isz)
              + 2 * D * (H + W) * tbl_isz
              + (2 << 20))
    vmem_limit = int(min(int(0.75 * vmem_cap), max(16 << 20, demand)))

    kernel = functools.partial(_pos_embed_kernel, n_col_chunks=n_col_chunks)

    out = pl.pallas_call(
        kernel,
        out_shape=jax.ShapeDtypeStruct((B, 2 * D, HW), out_dtype),
        grid_spec=pl.GridSpec(
            grid=grid,
            in_specs=[
                # Tiny tables stay resident in VMEM (constant index map).
                pl.BlockSpec((D, W), lambda bi, ci: (0, 0)),
                pl.BlockSpec((D, H), lambda bi, ci: (0, 0)),
            ],
            # Lane-dense output block: last dim H*W keeps stores/DMAs dense.
            out_specs=pl.BlockSpec((Bb, Cc, HW), lambda bi, ci: (bi, ci, 0)),
        ),
        compiler_params=pltpu.CompilerParams(
            dimension_semantics=("parallel", "parallel"),
            vmem_limit_bytes=vmem_limit,
        ),
    )(col_t, row_t)

    return out.reshape(B, 2 * D, H, W)


class PositionEmbeddingLearned:
    """Mirror of the PyTorch module (forward semantics only)."""

    def __init__(self, num_pos_feats=256, max_rows=50, max_cols=50, *, key=None):
        if key is None:
            key = jax.random.PRNGKey(0)
        k_row, k_col = jax.random.split(key)
        # nn.init.uniform_ default range is [0, 1).
        self.row_embed = jax.random.uniform(
            k_row, (max_rows, num_pos_feats), dtype=jnp.float32)
        self.col_embed = jax.random.uniform(
            k_col, (max_cols, num_pos_feats), dtype=jnp.float32)
        # TODO(synk): parameter registration / gradient updates (nn.Embedding
        # training) have no in-kernel equivalent; weights are plain arrays here.

    def __call__(self, x, *, out_dtype=None):
        return position_embedding_learned(x, self.row_embed, self.col_embed,
                                           out_dtype=out_dtype)


def _reference(x, row_weight, col_weight):
    """Pure-JAX reference matching the PyTorch forward exactly."""
    B = x.shape[0]
    H, W = x.shape[-2], x.shape[-1]
    D = row_weight.shape[-1]
    x_emb = col_weight[:W]                                       # (W, D)
    y_emb = row_weight[:H]                                       # (H, D)
    pos = jnp.concatenate(
        [jnp.broadcast_to(x_emb[None, :, :], (H, W, D)),
         jnp.broadcast_to(y_emb[:, None, :], (H, W, D))],
        axis=-1)                                                 # (H, W, 2D)
    pos = jnp.transpose(pos, (2, 0, 1))[None]                    # (1, 2D, H, W)
    return jnp.broadcast_to(pos, (B, 2 * D, H, W))


if __name__ == "__main__":
    key = jax.random.PRNGKey(0)
    k_x, k_mod = jax.random.split(key)

    # Small shapes consistent with the module: B=2, C=4, H=W=16, num_pos_feats=32.
    x = jax.random.normal(k_x, (2, 4, 16, 16), dtype=jnp.float32)
    mod = PositionEmbeddingLearned(num_pos_feats=32, max_rows=50, max_cols=50,
                                   key=k_mod)

    pos = mod(x)
    pos = jax.block_until_ready(pos)

    ref = _reference(x, mod.row_embed, mod.col_embed)

    assert pos.shape == (x.shape[0], 2 * 32, 16, 16), pos.shape
    assert pos.dtype == jnp.float32
    assert bool(jnp.all(pos == ref))

    print("KERNEL_OK")
</pallas_src>

<mosaic_0001>
module attributes {stable_mosaic.version = 11 : i64} {
  func.func @_pos_embed_kernel(%arg0: i32, %arg1: i32, %arg2: memref<32x16xf32, #tpu.memory_space<vmem>>, %arg3: memref<32x16xf32, #tpu.memory_space<vmem>>, %arg4: memref<2x32x256xf32, #tpu.memory_space<vmem>>) attributes {dimension_semantics = [#tpu.dimension_semantics<parallel>, #tpu.dimension_semantics<parallel>], iteration_bounds = array<i64: 1, 2>, scalar_prefetch = 0 : i64, scratch_operands = 0 : i64, tpu.core_type = #tpu.core_type<tc>, window_params = [{pipeline_mode = #tpu.pipeline_mode<synchronous>, transform_indices = @transform_0, window_bounds = array<i64: 32, 16>}, {pipeline_mode = #tpu.pipeline_mode<synchronous>, transform_indices = @transform_1, window_bounds = array<i64: 32, 16>}, {transform_indices = @transform_2, window_bounds = array<i64: 2, 32, 256>}]} {
    %c1_i32 = arith.constant 1 : i32
    %0 = arith.cmpi slt, %arg1, %c1_i32 : i32
    %1 = arith.extui %0 : i1 to i32
    %c0_i32 = arith.constant 0 : i32
    %2 = arith.cmpi ne, %1, %c0_i32 : i32
    scf.if %2 {
      %c32_i32 = arith.constant 32 : i32
      %6 = arith.muli %arg1, %c32_i32 : i32
      %7 = tpu.assume_multiple %6, 32 : i32
      %8 = arith.index_cast %7 : i32 to index
      %c0 = arith.constant 0 : index
      %9 = vector.load %arg2[%8, %c0] : memref<32x16xf32, #tpu.memory_space<vmem>>, vector<32x16xf32>
      %10 = tpu.concatenate %9, %9, %9, %9, %9, %9, %9, %9, %9, %9, %9, %9, %9, %9, %9, %9 in 1 : vector<32x16xf32>, vector<32x16xf32>, vector<32x16xf32>, vector<32x16xf32>, vector<32x16xf32>, vector<32x16xf32>, vector<32x16xf32>, vector<32x16xf32>, vector<32x16xf32>, vector<32x16xf32>, vector<32x16xf32>, vector<32x16xf32>, vector<32x16xf32>, vector<32x16xf32>, vector<32x16xf32>, vector<32x16xf32> -> vector<32x256xf32>
      %c0_2 = arith.constant 0 : index
      %c0_3 = arith.constant 0 : index
      %c0_4 = arith.constant 0 : index
      %11 = vector.load %arg4[%c0_2, %c0_3, %c0_4] : memref<2x32x256xf32, #tpu.memory_space<vmem>>, vector<1x32x256xf32>
      %12 = vector.shape_cast %11 : vector<1x32x256xf32> to vector<32x256xf32>
      %13 = vector.shape_cast %10 : vector<32x256xf32> to vector<1x32x256xf32>
      tpu.vector_store %arg4[%c0_2, %c0_3, %c0_4], %13 {strides = array<i32>} : memref<2x32x256xf32, #tpu.memory_space<vmem>>, vector<1x32x256xf32>,
      %c1 = arith.constant 1 : index
      %c0_5 = arith.constant 0 : index
      %c0_6 = arith.constant 0 : index
      %14 = vector.load %arg4[%c1, %c0_5, %c0_6] : memref<2x32x256xf32, #tpu.memory_space<vmem>>, vector<1x32x256xf32>
      %15 = vector.shape_cast %14 : vector<1x32x256xf32> to vector<32x256xf32>
      %16 = vector.shape_cast %10 : vector<32x256xf32> to vector<1x32x256xf32>
      tpu.vector_store %arg4[%c1, %c0_5, %c0_6], %16 {strides = array<i32>} : memref<2x32x256xf32, #tpu.memory_space<vmem>>, vector<1x32x256xf32>,
    } else {
    }
    %c1_i32_0 = arith.constant 1 : i32
    %3 = arith.cmpi sge, %arg1, %c1_i32_0 : i32
    %4 = arith.extui %3 : i1 to i32
    %c0_i32_1 = arith.constant 0 : i32
    %5 = arith.cmpi ne, %4, %c0_i32_1 : i32
    scf.if %5 {
      %c1_i32_2 = arith.constant 1 : i32
      %6 = arith.subi %arg1, %c1_i32_2 : i32
      %c32_i32 = arith.constant 32 : i32
      %7 = arith.muli %6, %c32_i32 : i32
      %8 = tpu.assume_multiple %7, 32 : i32
      %9 = arith.index_cast %8 : i32 to index
      %c0 = arith.constant 0 : index
      %10 = vector.load %arg3[%9, %c0] : memref<32x16xf32, #tpu.memory_space<vmem>>, vector<32x16xf32>
      %11 = vector.extract_strided_slice %10 {offsets = [0, 0], sizes = [32, 1], strides = [1, 1]} : vector<32x16xf32> to vector<32x1xf32>
      %12 = vector.shape_cast %11 : vector<32x1xf32> to vector<32x1xf32>
      %13 = vector.broadcast %12 : vector<32x1xf32> to vector<32x16xf32>
      %14 = vector.extract_strided_slice %10 {offsets = [0, 1], sizes = [32, 1], strides = [1, 1]} : vector<32x16xf32> to vector<32x1xf32>
      %15 = vector.shape_cast %14 : vector<32x1xf32> to vector<32x1xf32>
      %16 = vector.broadcast %15 : vector<32x1xf32> to vector<32x16xf32>
      %17 = vector.extract_strided_slice %10 {offsets = [0, 2], sizes = [32, 1], strides = [1, 1]} : vector<32x16xf32> to vector<32x1xf32>
      %18 = vector.shape_cast %17 : vector<32x1xf32> to vector<32x1xf32>
      %19 = vector.broadcast %18 : vector<32x1xf32> to vector<32x16xf32>
      %20 = vector.extract_strided_slice %10 {offsets = [0, 3], sizes = [32, 1], strides = [1, 1]} : vector<32x16xf32> to vector<32x1xf32>
      %21 = vector.shape_cast %20 : vector<32x1xf32> to vector<32x1xf32>
      %22 = vector.broadcast %21 : vector<32x1xf32> to vector<32x16xf32>
      %23 = vector.extract_strided_slice %10 {offsets = [0, 4], sizes = [32, 1], strides = [1, 1]} : vector<32x16xf32> to vector<32x1xf32>
      %24 = vector.shape_cast %23 : vector<32x1xf32> to vector<32x1xf32>
      %25 = vector.broadcast %24 : vector<32x1xf32> to vector<32x16xf32>
      %26 = vector.extract_strided_slice %10 {offsets = [0, 5], sizes = [32, 1], strides = [1, 1]} : vector<32x16xf32> to vector<32x1xf32>
      %27 = vector.shape_cast %26 : vector<32x1xf32> to vector<32x1xf32>
      %28 = vector.broadcast %27 : vector<32x1xf32> to vector<32x16xf32>
      %29 = vector.extract_strided_slice %10 {offsets = [0, 6], sizes = [32, 1], strides = [1, 1]} : vector<32x16xf32> to vector<32x1xf32>
      %30 = vector.shape_cast %29 : vector<32x1xf32> to vector<32x1xf32>
      %31 = vector.broadcast %30 : vector<32x1xf32> to vector<32x16xf32>
      %32 = vector.extract_strided_slice %10 {offsets = [0, 7], sizes = [32, 1], strides = [1, 1]} : vector<32x16xf32> to vector<32x1xf32>
      %33 = vector.shape_cast %32 : vector<32x1xf32> to vector<32x1xf32>
      %34 = vector.broadcast %33 : vector<32x1xf32> to vector<32x16xf32>
      %35 = vector.extract_strided_slice %10 {offsets = [0, 8], sizes = [32, 1], strides = [1, 1]} : vector<32x16xf32> to vector<32x1xf32>
      %36 = vector.shape_cast %35 : vector<32x1xf32> to vector<32x1xf32>
      %37 = vector.broadcast %36 : vector<32x1xf32> to vector<32x16xf32>
      %38 = vector.extract_strided_slice %10 {offsets = [0, 9], sizes = [32, 1], strides = [1, 1]} : vector<32x16xf32> to vector<32x1xf32>
      %39 = vector.shape_cast %38 : vector<32x1xf32> to vector<32x1xf32>
      %40 = vector.broadcast %39 : vector<32x1xf32> to vector<32x16xf32>
      %41 = vector.extract_strided_slice %10 {offsets = [0, 10], sizes = [32, 1], strides = [1, 1]} : vector<32x16xf32> to vector<32x1xf32>
      %42 = vector.shape_cast %41 : vector<32x1xf32> to vector<32x1xf32>
      %43 = vector.broadcast %42 : vector<32x1xf32> to vector<32x16xf32>
      %44 = vector.extract_strided_slice %10 {offsets = [0, 11], sizes = [32, 1], strides = [1, 1]} : vector<32x16xf32> to vector<32x1xf32>
      %45 = vector.shape_cast %44 : vector<32x1xf32> to vector<32x1xf32>
      %46 = vector.broadcast %45 : vector<32x1xf32> to vector<32x16xf32>
      %47 = vector.extract_strided_slice %10 {offsets = [0, 12], sizes = [32, 1], strides = [1, 1]} : vector<32x16xf32> to vector<32x1xf32>
      %48 = vector.shape_cast %47 : vector<32x1xf32> to vector<32x1xf32>
      %49 = vector.broadcast %48 : vector<32x1xf32> to vector<32x16xf32>
      %50 = vector.extract_strided_slice %10 {offsets = [0, 13], sizes = [32, 1], strides = [1, 1]} : vector<32x16xf32> to vector<32x1xf32>
      %51 = vector.shape_cast %50 : vector<32x1xf32> to vector<32x1xf32>
      %52 = vector.broadcast %51 : vector<32x1xf32> to vector<32x16xf32>
      %53 = vector.extract_strided_slice %10 {offsets = [0, 14], sizes = [32, 1], strides = [1, 1]} : vector<32x16xf32> to vector<32x1xf32>
      %54 = vector.shape_cast %53 : vector<32x1xf32> to vector<32x1xf32>
      %55 = vector.broadcast %54 : vector<32x1xf32> to vector<32x16xf32>
      %56 = vector.extract_strided_slice %10 {offsets = [0, 15], sizes = [32, 1], strides = [1, 1]} : vector<32x16xf32> to vector<32x1xf32>
      %57 = vector.shape_cast %56 : vector<32x1xf32> to vector<32x1xf32>
      %58 = vector.broadcast %57 : vector<32x1xf32> to vector<32x16xf32>
      %59 = tpu.concatenate %13, %16, %19, %22, %25, %28, %31, %34, %37, %40, %43, %46, %49, %52, %55, %58 in 1 : vector<32x16xf32>, vector<32x16xf32>, vector<32x16xf32>, vector<32x16xf32>, vector<32x16xf32>, vector<32x16xf32>, vector<32x16xf32>, vector<32x16xf32>, vector<32x16xf32>, vector<32x16xf32>, vector<32x16xf32>, vector<32x16xf32>, vector<32x16xf32>, vector<32x16xf32>, vector<32x16xf32>, vector<32x16xf32> -> vector<32x256xf32>
      %c0_3 = arith.constant 0 : index
      %c0_4 = arith.constant 0 : index
      %c0_5 = arith.constant 0 : index
      %60 = vector.load %arg4[%c0_3, %c0_4, %c0_5] : memref<2x32x256xf32, #tpu.memory_space<vmem>>, vector<1x32x256xf32>
      %61 = vector.shape_cast %60 : vector<1x32x256xf32> to vector<32x256xf32>
      %62 = vector.shape_cast %59 : vector<32x256xf32> to vector<1x32x256xf32>
      tpu.vector_store %arg4[%c0_3, %c0_4, %c0_5], %62 {strides = array<i32>} : memref<2x32x256xf32, #tpu.memory_space<vmem>>, vector<1x32x256xf32>,
      %c1 = arith.constant 1 : index
      %c0_6 = arith.constant 0 : index
      %c0_7 = arith.constant 0 : index
      %63 = vector.load %arg4[%c1, %c0_6, %c0_7] : memref<2x32x256xf32, #tpu.memory_space<vmem>>, vector<1x32x256xf32>
      %64 = vector.shape_cast %63 : vector<1x32x256xf32> to vector<32x256xf32>
      %65 = vector.shape_cast %59 : vector<32x256xf32> to vector<1x32x256xf32>
      tpu.vector_store %arg4[%c1, %c0_6, %c0_7], %65 {strides = array<i32>} : memref<2x32x256xf32, #tpu.memory_space<vmem>>, vector<1x32x256xf32>,
    } else {
    }
    return
  }
  func.func @transform_0(%arg0: i32, %arg1: i32) -> (i32, i32) {
    %c0_i32 = arith.constant 0 : i32
    %c0_i32_0 = arith.constant 0 : i32
    %c0_i32_1 = arith.constant 0 : i32
    return %c0_i32, %c0_i32_0 : i32, i32
  }
  func.func @transform_1(%arg0: i32, %arg1: i32) -> (i32, i32) {
    %c0_i32 = arith.constant 0 : i32
    %c0_i32_0 = arith.constant 0 : i32
    %c0_i32_1 = arith.constant 0 : i32
    return %c0_i32, %c0_i32_0 : i32, i32
  }
  func.func @transform_2(%arg0: i32, %arg1: i32) -> (i32, i32, i32) {
    %c0_i32 = arith.constant 0 : i32
    %c0_i32_0 = arith.constant 0 : i32
    return %arg0, %arg1, %c0_i32 : i32, i32, i32
  }
}

</mosaic_0001>

<llo_original>
// kernel: tpu_custom_call.1
$region0: #{tpu_custom_call.1}
  #allocation0 [shape = 'u32[]', space=smem, size = 0x4, offset = 0x4, fixed_abs, tag = 'smem constant byte address 0x4 - core index']
  #allocation1 [shape = 'u32[144,128]{1,0:T(1,128)}', space=vmem, size = 0x12000, scoped, tag = 'internal scratch']
  #allocation4 [shape = 's32[]', space=sflag, size = 0x4, offset = 0, fixed_abs, tag = 'sflag constant byte address 0x0 - dummy sync flag']
  %s0 = inlined_call_operand.vmem [shape: f32[32,16], index: 0, kind: input, shape index: {}]
  %s1 = inlined_call_operand.vmem [shape: f32[32,16], index: 1, kind: input, shape index: {}]
  %s2 = inlined_call_operand.hbm [shape: f32[2,64,256], index: 2, kind: output, shape index: {}]
  %s3 = sld [smem:[#allocation0]]
  $region49: #{tpu_custom_call.1} parent=0
    _
  %s5 = ssub.s32 1, %s3
  %s6 = scalar_select 0, %s5, %s3
  $region1: #{tpu_custom_call.1} parent=0
    #allocation2 [shape = 'u8[131072]{0}', space=vmem, size = 0x20000, scoped, tag = 'output window, operand 0']
    #allocation3 [shape = 's32[2]{0}', space=sflag, size = 0x8, scoped, tag = 'scoped memory for tpu_custom_call.1']
    %7 = vsyncpa [#allocation3], 0
    %s8 = scalar_lea.sflag [#allocation3], 1
    %9 = vsyncpa %s8, 0
    loop: start=0, step=1, limit=4
    $region2: #{tpu_custom_call.1} parent=1 // loop_pre_header
      _
    $region3: #{tpu_custom_call.1} parent=1 // loop_header
      %s11 = sphi 0, %s15
      %p12 = scmp.ge.s32.totalorder %s11, 4
      %s18 = sphi 0, %s30
      %s19 = sphi 0, %s26
      %s20 = sphi 0, %s18
      %s21 = sphi 0, %s19
      %s22 = sphi 0, %s20
      %s23 = sphi 0, %s21
      %s31 = sphi 0, %s31
      %s33 = sphi 0, %s31
      %s34 = sphi 0, %s33
      %s48 = sphi 0, %s34
      %s52 = sphi 0, %s52
      %s54 = sphi 0, %s52
      %s55 = sphi 0, %s54
      %s69 = sphi 0, %s55
      %s77 = sphi 0, %s79
      %s80 = sphi 0, %s77
      %s81 = sphi 0, %s80
      %s97 = sphi 0, %s81
    $region4: #{tpu_custom_call.1} parent=1 // loop_header_branch
      %14 = sbr.rel (%p12) target = $region8
    $region5: #{tpu_custom_call.1} parent=1 // loop_body
      %s16 = ssub.s32 %s11, 1
      %s17 = ssub.s32 %s11, 2
      %s24 = sadd.s32 1, %s19
      %p25 = scmp.ge.s32.totalorder %s24, 2
      %s26 = scalar_select %p25, 0, %s24
      %s27 = sadd.s32 1, %s18
      %s28 = scalar_select %p25, %s27, %s18
      %p29 = scmp.ge.s32.totalorder %s28, 1
      %s30 = scalar_select %p29, 0, %s28
      %s32 = sadd.s32 %s31, 1
      %p35 = scmp.eq.s32.totalorder %s11, 1
      %p36 = scmp.ne.s32.totalorder %s31, %s33
      %p37 = scmp.eq.s32.totalorder %s11, 0
      %p38 = por %p36, %p37
      %p39 = scmp.ne.s32.totalorder %s31, %s33
      %p40 = scmp.eq.s32.totalorder %s16, 1
      %p41 = por %p39, %p40
      %p42 = scmp.ne.s32.totalorder %s33, %s34
      %p43 = scmp.eq.s32.totalorder %s16, 0
      %p44 = por %p42, %p43
      %p45 = scmp.ne.s32.totalorder %s33, %s34
      %p46 = scmp.eq.s32.totalorder %s17, 1
      %p47 = por %p45, %p46
      %p49 = scmp.ne.s32.totalorder %s34, %s48
      %p50 = scmp.eq.s32.totalorder %s17, 0
      %p51 = por %p49, %p50
      %s53 = sadd.s32 %s52, 1
      %p56 = scmp.eq.s32.totalorder %s11, 1
      %p57 = scmp.ne.s32.totalorder %s52, %s54
      %p58 = scmp.eq.s32.totalorder %s11, 0
      %p59 = por %p57, %p58
      %p60 = scmp.ne.s32.totalorder %s52, %s54
      %p61 = scmp.eq.s32.totalorder %s16, 1
      %p62 = por %p60, %p61
      %p63 = scmp.ne.s32.totalorder %s54, %s55
      %p64 = scmp.eq.s32.totalorder %s16, 0
      %p65 = por %p63, %p64
      %p66 = scmp.ne.s32.totalorder %s54, %s55
      %p67 = scmp.eq.s32.totalorder %s17, 1
      %p68 = por %p66, %p67
      %p70 = scmp.ne.s32.totalorder %s55, %s69
      %p71 = scmp.eq.s32.totalorder %s17, 0
      %p72 = por %p70, %p71
      %s73 = ssub.s32 %s18, %s30
      %s74 = ssub.s32 %s19, %s26
      %s75 = sor.u32 %s73, %s74
      %p76 = scmp.eq.s32.totalorder %s75, 0
      %s78 = sadd.s32 %s77, 1
      %s79 = scalar_select %p76, %s77, %s78
      %p82 = pneg %p76
      %p83 = scmp.eq.s32.totalorder %s11, 1
      %p84 = por %p82, %p83
      %p85 = scmp.ne.s32.totalorder %s77, %s80
      %p86 = scmp.eq.s32.totalorder %s11, 0
      %p87 = por %p85, %p86
      %p88 = scmp.ne.s32.totalorder %s77, %s80
      %p89 = scmp.eq.s32.totalorder %s16, 1
      %p90 = por %p88, %p89
      %p91 = scmp.ne.s32.totalorder %s80, %s81
      %p92 = scmp.eq.s32.totalorder %s16, 0
      %p93 = por %p91, %p92
      %p94 = scmp.ne.s32.totalorder %s80, %s81
      %p95 = scmp.eq.s32.totalorder %s17, 1
      %p96 = por %p94, %p95
      %p98 = scmp.ne.s32.totalorder %s81, %s97
      %p99 = scmp.eq.s32.totalorder %s17, 0
      %p100 = por %p98, %p99
      %p101 = scmp.le.s32.totalorder 1, %s11
      %p102 = scmp.lt.s32.totalorder %s11, 3
      %p103 = pnand %p101, %p102
      %p104 = pneg %p103
      // Predicated region
      $region9: #{tpu_custom_call.1} parent=5 // pred_check
        _
      $region10: #{tpu_custom_call.1} parent=5 // pred_check_branch
        %106 = sbr.rel (%p103) target = $region12
      $region11: #{tpu_custom_call.1} parent=5 // pred_region
        %s107 = ssub.s32 %s11, 1
        // Predicated region
        $region13: #{tpu_custom_call.1} parent=11 // pred_check
          %p108 = pneg %p44
        $region14: #{tpu_custom_call.1} parent=11 // pred_check_branch
          %110 = sbr.rel (%p108) target = $region16
        $region15: #{tpu_custom_call.1} parent=11 // pred_region
          _
        $region16: #{tpu_custom_call.1} parent=11 // pred_fallthru
          _
        // Predicated region
        $region17: #{tpu_custom_call.1} parent=11 // pred_check
          %p111 = pneg %p65
        $region18: #{tpu_custom_call.1} parent=11 // pred_check_branch
          %113 = sbr.rel (%p111) target = $region20
        $region19: #{tpu_custom_call.1} parent=11 // pred_region
          _
        $region20: #{tpu_custom_call.1} parent=11 // pred_fallthru
          _
      $region12: #{tpu_custom_call.1} parent=5 // pred_fallthru
        _
      %p114 = scmp.lt.s32.totalorder %s11, 2
      // Predicated region
      $region21: #{tpu_custom_call.1} parent=5 // pred_check
        %p115 = pneg %p114
      $region22: #{tpu_custom_call.1} parent=5 // pred_check_branch
        %117 = sbr.rel (%p115) target = $region24
      $region23: #{tpu_custom_call.1} parent=5 // pred_region
        _
      $region24: #{tpu_custom_call.1} parent=5 // pred_fallthru
        _
      %p118 = scmp.le.s32.totalorder 1, %s11
      %p119 = scmp.lt.s32.totalorder %s11, 3
      %p120 = pnand %p118, %p119
      %p121 = pneg %p120
      // Predicated region
      $region25: #{tpu_custom_call.1} parent=5 // pred_check
        _
      $region26: #{tpu_custom_call.1} parent=5 // pred_check_branch
        %123 = sbr.rel (%p120) target = $region28
      $region27: #{tpu_custom_call.1} parent=5 // pred_region
        %s124 = ssub.s32 %s11, 1
        %p125 = pneg %p44
        %p126 = pneg %p41
        %p127 = pneg %p65
        %p128 = pneg %p62
        %p129 = pneg %p93
        %p130 = pneg %p90
        %s131 = sand.u32 %s80, 1
        %s132 = scalar_lea.sflag [#allocation3], %s131
        %s133 = sand.u32 %s80, 1
        %s134 = smul.addr %s133, 128
        %s135 = scalar_lea.vmem [#allocation2], %s134
        %s136 = smul.u32 2, %s20
        %s137 = smul.u32 4, %s21
        %p138 = scmp.lt.s32.totalorder %s21, 1
        // Predicated region
        $region29: #{tpu_custom_call.1} parent=27 // pred_check
          %p139 = pneg %p138
        $region30: #{tpu_custom_call.1} parent=27 // pred_check_branch
          %141 = sbr.rel (%p139) target = $region32
        $region31: #{tpu_custom_call.1} parent=27 // pred_region
          %s142 = smul.u32 %s21, 32
          %s143 = scalar_lea.vmem %s0, %s142
          %v144 = vld [vmem:[%s143] sm:$0xff]
          %v145 = vld [vmem:[%s143 + $0x8] sm:$0xff]
          %v146 = vld [vmem:[%s143 + $0x10] sm:$0xff]
          %v147 = vld [vmem:[%s143 + $0x18] sm:$0xff]
          %152 = vrot.lane.b32.xlu0 %v144, 16
          %v153 = vpop.permute.xlu0 %152
          %154 = vrot.lane.b32.xlu0 %v145, 16
          %v155 = vpop.permute.xlu0 %154
          %156 = vrot.lane.b32.xlu0 %v146, 16
          %v157 = vpop.permute.xlu0 %156
          %158 = vrot.lane.b32.xlu0 %v147, 16
          %v159 = vpop.permute.xlu0 %158
          %164 = vrot.lane.b32.xlu0 %v144, 32
          %v165 = vpop.permute.xlu0 %164
          %166 = vrot.lane.b32.xlu0 %v145, 32
          %v167 = vpop.permute.xlu0 %166
          %168 = vrot.lane.b32.xlu0 %v146, 32
          %v169 = vpop.permute.xlu0 %168
          %170 = vrot.lane.b32.xlu0 %v147, 32
          %v171 = vpop.permute.xlu0 %170
          %176 = vrot.lane.b32.xlu0 %v144, 48
          %v177 = vpop.permute.xlu0 %176
          %178 = vrot.lane.b32.xlu0 %v145, 48
          %v179 = vpop.permute.xlu0 %178
          %180 = vrot.lane.b32.xlu0 %v146, 48
          %v181 = vpop.permute.xlu0 %180
          %182 = vrot.lane.b32.xlu0 %v147, 48
          %v183 = vpop.permute.xlu0 %182
          %188 = vrot.lane.b32.xlu0 %v144, 64
          %v189 = vpop.permute.xlu0 %188
          %190 = vrot.lane.b32.xlu0 %v145, 64
          %v191 = vpop.permute.xlu0 %190
          %192 = vrot.lane.b32.xlu0 %v146, 64
          %v193 = vpop.permute.xlu0 %192
          %194 = vrot.lane.b32.xlu0 %v147, 64
          %v195 = vpop.permute.xlu0 %194
          %200 = vrot.lane.b32.xlu0 %v144, 80
          %v201 = vpop.permute.xlu0 %200
          %202 = vrot.lane.b32.xlu0 %v145, 80
          %v203 = vpop.permute.xlu0 %202
          %204 = vrot.lane.b32.xlu0 %v146, 80
          %v205 = vpop.permute.xlu0 %204
          %206 = vrot.lane.b32.xlu0 %v147, 80
          %v207 = vpop.permute.xlu0 %206
          %212 = vrot.lane.b32.xlu0 %v144, 96
          %v213 = vpop.permute.xlu0 %212
          %214 = vrot.lane.b32.xlu0 %v145, 96
          %v215 = vpop.permute.xlu0 %214
          %216 = vrot.lane.b32.xlu0 %v146, 96
          %v217 = vpop.permute.xlu0 %216
          %218 = vrot.lane.b32.xlu0 %v147, 96
          %v219 = vpop.permute.xlu0 %218
          %224 = vrot.lane.b32.xlu0 %v144, 112
          %v225 = vpop.permute.xlu0 %224
          %226 = vrot.lane.b32.xlu0 %v145, 112
          %v227 = vpop.permute.xlu0 %226
          %228 = vrot.lane.b32.xlu0 %v146, 112
          %v229 = vpop.permute.xlu0 %228
          %230 = vrot.lane.b32.xlu0 %v147, 112
          %v231 = vpop.permute.xlu0 %230
          %vm236 = vcmask 130048
          %v237 = vsel %vm236, %v144, %v153
          %v238 = vsel %vm236, %v145, %v155
          %v239 = vsel %vm236, %v146, %v157
          %v240 = vsel %vm236, %v147, %v159
          %vm241 = vcmask 261120
          %v242 = vsel %vm241, %v237, %v165
          %v243 = vsel %vm241, %v238, %v167
          %v244 = vsel %vm241, %v239, %v169
          %v245 = vsel %vm241, %v240, %v171
          %vm246 = vcmask 392192
          %v247 = vsel %vm246, %v242, %v177
          %v248 = vsel %vm246, %v243, %v179
          %v249 = vsel %vm246, %v244, %v181
          %v250 = vsel %vm246, %v245, %v183
          %vm251 = vcmask 523264
          %v252 = vsel %vm251, %v247, %v189
          %v253 = vsel %vm251, %v248, %v191
          %v254 = vsel %vm251, %v249, %v193
          %v255 = vsel %vm251, %v250, %v195
          %vm256 = vcmask 654336
          %v257 = vsel %vm256, %v252, %v201
          %v258 = vsel %vm256, %v253, %v203
          %v259 = vsel %vm256, %v254, %v205
          %v260 = vsel %vm256, %v255, %v207
          %vm261 = vcmask 785408
          %v262 = vsel %vm261, %v257, %v213
          %v263 = vsel %vm261, %v258, %v215
          %v264 = vsel %vm261, %v259, %v217
          %v265 = vsel %vm261, %v260, %v219
          %vm266 = vcmask 916480
          %v267 = vsel %vm266, %v262, %v225
          %v268 = vsel %vm266, %v263, %v227
          %v269 = vsel %vm266, %v264, %v229
          %v270 = vsel %vm266, %v265, %v231
          %271 = vst [vmem:[%s135] sm:$0xff] %v267
          %272 = vst [vmem:[%s135 + $0x8] sm:$0xff] %v267
          %273 = vst [vmem:[%s135 + $0x10] sm:$0xff] %v268
          %274 = vst [vmem:[%s135 + $0x18] sm:$0xff] %v268
          %275 = vst [vmem:[%s135 + $0x20] sm:$0xff] %v269
          %276 = vst [vmem:[%s135 + $0x28] sm:$0xff] %v269
          %277 = vst [vmem:[%s135 + $0x30] sm:$0xff] %v270
          %278 = vst [vmem:[%s135 + $0x38] sm:$0xff] %v270
          %s279 = scalar_lea.vmem %s135, 64 [#allocation2]
          %280 = vst [vmem:[%s279] sm:$0xff] %v267
          %281 = vst [vmem:[%s279 + $0x8] sm:$0xff] %v267
          %282 = vst [vmem:[%s279 + $0x10] sm:$0xff] %v268
          %283 = vst [vmem:[%s279 + $0x18] sm:$0xff] %v268
          %284 = vst [vmem:[%s279 + $0x20] sm:$0xff] %v269
          %285 = vst [vmem:[%s279 + $0x28] sm:$0xff] %v269
          %286 = vst [vmem:[%s279 + $0x30] sm:$0xff] %v270
          %287 = vst [vmem:[%s279 + $0x38] sm:$0xff] %v270
        $region32: #{tpu_custom_call.1} parent=27 // pred_fallthru
          _
        %p288 = scmp.ge.s32.totalorder %s21, 1
        // Predicated region
        $region33: #{tpu_custom_call.1} parent=27 // pred_check
          %p289 = pneg %p288
        $region34: #{tpu_custom_call.1} parent=27 // pred_check_branch
          %291 = sbr.rel (%p289) target = $region36
        $region35: #{tpu_custom_call.1} parent=27 // pred_region
          %s292 = ssub.s32 %s21, 1
          %s293 = smul.u32 %s292, 32
          %s294 = scalar_lea.vmem %s1, %s293
          %v295 = vld [vmem:[%s294] sm:$0xff]
          %v296 = vld [vmem:[%s294 + $0x8] sm:$0xff]
          %v297 = vld [vmem:[%s294 + $0x10] sm:$0xff]
          %v298 = vld [vmem:[%s294 + $0x18] sm:$0xff]
          %300 = vset.pattern.permute.xlu0 0
          %301 = vperm.xlu0 %300, %v295
          %v302 = vpop.permute.xlu0 %301
          %305 = vset.pattern.permute.xlu0 0
          %306 = vperm.xlu0 %305, %v296
          %v307 = vpop.permute.xlu0 %306
          %310 = vset.pattern.permute.xlu0 0
          %311 = vperm.xlu0 %310, %v297
          %v312 = vpop.permute.xlu0 %311
          %315 = vset.pattern.permute.xlu0 0
          %316 = vperm.xlu0 %315, %v298
          %v317 = vpop.permute.xlu0 %316
          %319 = vset.pattern.permute.xlu0 1
          %320 = vperm.xlu0 %319, %v295
          %v321 = vpop.permute.xlu0 %320
          %323 = vset.pattern.permute.xlu0 1
          %324 = vperm.xlu0 %323, %v296
          %v325 = vpop.permute.xlu0 %324
          %327 = vset.pattern.permute.xlu0 1
          %328 = vperm.xlu0 %327, %v297
          %v329 = vpop.permute.xlu0 %328
          %331 = vset.pattern.permute.xlu0 1
          %332 = vperm.xlu0 %331, %v298
          %v333 = vpop.permute.xlu0 %332
          %335 = vset.pattern.permute.xlu0 2
          %336 = vperm.xlu0 %335, %v295
          %v337 = vpop.permute.xlu0 %336
          %339 = vset.pattern.permute.xlu0 2
          %340 = vperm.xlu0 %339, %v296
          %v341 = vpop.permute.xlu0 %340
          %343 = vset.pattern.permute.xlu0 2
          %344 = vperm.xlu0 %343, %v297
          %v345 = vpop.permute.xlu0 %344
          %347 = vset.pattern.permute.xlu0 2
          %348 = vperm.xlu0 %347, %v298
          %v349 = vpop.permute.xlu0 %348
          %351 = vset.pattern.permute.xlu0 3
          %352 = vperm.xlu0 %351, %v295
          %v353 = vpop.permute.xlu0 %352
          %355 = vset.pattern.permute.xlu0 3
          %356 = vperm.xlu0 %355, %v296
          %v357 = vpop.permute.xlu0 %356
          %359 = vset.pattern.permute.xlu0 3
          %360 = vperm.xlu0 %359, %v297
          %v361 = vpop.permute.xlu0 %360
          %363 = vset.pattern.permute.xlu0 3
          %364 = vperm.xlu0 %363, %v298
          %v365 = vpop.permute.xlu0 %364
          %367 = vset.pattern.permute.xlu0 4
          %368 = vperm.xlu0 %367, %v295
          %v369 = vpop.permute.xlu0 %368
          %371 = vset.pattern.permute.xlu0 4
          %372 = vperm.xlu0 %371, %v296
          %v373 = vpop.permute.xlu0 %372
          %375 = vset.pattern.permute.xlu0 4
          %376 = vperm.xlu0 %375, %v297
          %v377 = vpop.permute.xlu0 %376
          %379 = vset.pattern.permute.xlu0 4
          %380 = vperm.xlu0 %379, %v298
          %v381 = vpop.permute.xlu0 %380
          %383 = vset.pattern.permute.xlu0 5
          %384 = vperm.xlu0 %383, %v295
          %v385 = vpop.permute.xlu0 %384
          %387 = vset.pattern.permute.xlu0 5
          %388 = vperm.xlu0 %387, %v296
          %v389 = vpop.permute.xlu0 %388
          %391 = vset.pattern.permute.xlu0 5
          %392 = vperm.xlu0 %391, %v297
          %v393 = vpop.permute.xlu0 %392
          %395 = vset.pattern.permute.xlu0 5
          %396 = vperm.xlu0 %395, %v298
          %v397 = vpop.permute.xlu0 %396
          %399 = vset.pattern.permute.xlu0 6
          %400 = vperm.xlu0 %399, %v295
          %v401 = vpop.permute.xlu0 %400
          %403 = vset.pattern.permute.xlu0 6
          %404 = vperm.xlu0 %403, %v296
          %v405 = vpop.permute.xlu0 %404
          %407 = vset.pattern.permute.xlu0 6
          %408 = vperm.xlu0 %407, %v297
          %v409 = vpop.permute.xlu0 %408
          %411 = vset.pattern.permute.xlu0 6
          %412 = vperm.xlu0 %411, %v298
          %v413 = vpop.permute.xlu0 %412
          %415 = vset.pattern.permute.xlu0 7
          %416 = vperm.xlu0 %415, %v295
          %v417 = vpop.permute.xlu0 %416
          %419 = vset.pattern.permute.xlu0 7
          %420 = vperm.xlu0 %419, %v296
          %v421 = vpop.permute.xlu0 %420
          %423 = vset.pattern.permute.xlu0 7
          %424 = vperm.xlu0 %423, %v297
          %v425 = vpop.permute.xlu0 %424
          %427 = vset.pattern.permute.xlu0 7
          %428 = vperm.xlu0 %427, %v298
          %v429 = vpop.permute.xlu0 %428
          %431 = vset.pattern.permute.xlu0 8
          %432 = vperm.xlu0 %431, %v295
          %v433 = vpop.permute.xlu0 %432
          %435 = vset.pattern.permute.xlu0 8
          %436 = vperm.xlu0 %435, %v296
          %v437 = vpop.permute.xlu0 %436
          %439 = vset.pattern.permute.xlu0 8
          %440 = vperm.xlu0 %439, %v297
          %v441 = vpop.permute.xlu0 %440
          %443 = vset.pattern.permute.xlu0 8
          %444 = vperm.xlu0 %443, %v298
          %v445 = vpop.permute.xlu0 %444
          %447 = vset.pattern.permute.xlu0 9
          %448 = vperm.xlu0 %447, %v295
          %v449 = vpop.permute.xlu0 %448
          %451 = vset.pattern.permute.xlu0 9
          %452 = vperm.xlu0 %451, %v296
          %v453 = vpop.permute.xlu0 %452
          %455 = vset.pattern.permute.xlu0 9
          %456 = vperm.xlu0 %455, %v297
          %v457 = vpop.permute.xlu0 %456
          %459 = vset.pattern.permute.xlu0 9
          %460 = vperm.xlu0 %459, %v298
          %v461 = vpop.permute.xlu0 %460
          %463 = vset.pattern.permute.xlu0 10
          %464 = vperm.xlu0 %463, %v295
          %v465 = vpop.permute.xlu0 %464
          %467 = vset.pattern.permute.xlu0 10
          %468 = vperm.xlu0 %467, %v296
          %v469 = vpop.permute.xlu0 %468
          %471 = vset.pattern.permute.xlu0 10
          %472 = vperm.xlu0 %471, %v297
          %v473 = vpop.permute.xlu0 %472
          %475 = vset.pattern.permute.xlu0 10
          %476 = vperm.xlu0 %475, %v298
          %v477 = vpop.permute.xlu0 %476
          %479 = vset.pattern.permute.xlu0 11
          %480 = vperm.xlu0 %479, %v295
          %v481 = vpop.permute.xlu0 %480
          %483 = vset.pattern.permute.xlu0 11
          %484 = vperm.xlu0 %483, %v296
          %v485 = vpop.permute.xlu0 %484
          %487 = vset.pattern.permute.xlu0 11
          %488 = vperm.xlu0 %487, %v297
          %v489 = vpop.permute.xlu0 %488
          %491 = vset.pattern.permute.xlu0 11
          %492 = vperm.xlu0 %491, %v298
          %v493 = vpop.permute.xlu0 %492
          %495 = vset.pattern.permute.xlu0 12
          %496 = vperm.xlu0 %495, %v295
          %v497 = vpop.permute.xlu0 %496
          %499 = vset.pattern.permute.xlu0 12
          %500 = vperm.xlu0 %499, %v296
          %v501 = vpop.permute.xlu0 %500
          %503 = vset.pattern.permute.xlu0 12
          %504 = vperm.xlu0 %503, %v297
          %v505 = vpop.permute.xlu0 %504
          %507 = vset.pattern.permute.xlu0 12
          %508 = vperm.xlu0 %507, %v298
          %v509 = vpop.permute.xlu0 %508
          %511 = vset.pattern.permute.xlu0 13
          %512 = vperm.xlu0 %511, %v295
          %v513 = vpop.permute.xlu0 %512
          %515 = vset.pattern.permute.xlu0 13
          %516 = vperm.xlu0 %515, %v296
          %v517 = vpop.permute.xlu0 %516
          %519 = vset.pattern.permute.xlu0 13
          %520 = vperm.xlu0 %519, %v297
          %v521 = vpop.permute.xlu0 %520
          %523 = vset.pattern.permute.xlu0 13
          %524 = vperm.xlu0 %523, %v298
          %v525 = vpop.permute.xlu0 %524
          %527 = vset.pattern.permute.xlu0 14
          %528 = vperm.xlu0 %527, %v295
          %v529 = vpop.permute.xlu0 %528
          %531 = vset.pattern.permute.xlu0 14
          %532 = vperm.xlu0 %531, %v296
          %v533 = vpop.permute.xlu0 %532
          %535 = vset.pattern.permute.xlu0 14
          %536 = vperm.xlu0 %535, %v297
          %v537 = vpop.permute.xlu0 %536
          %539 = vset.pattern.permute.xlu0 14
          %540 = vperm.xlu0 %539, %v298
          %v541 = vpop.permute.xlu0 %540
          %543 = vset.pattern.permute.xlu0 15
          %544 = vperm.xlu0 %543, %v295
          %v545 = vpop.permute.xlu0 %544
          %547 = vset.pattern.permute.xlu0 15
          %548 = vperm.xlu0 %547, %v296
          %v549 = vpop.permute.xlu0 %548
          %551 = vset.pattern.permute.xlu0 15
          %552 = vperm.xlu0 %551, %v297
          %v553 = vpop.permute.xlu0 %552
          %555 = vset.pattern.permute.xlu0 15
          %556 = vperm.xlu0 %555, %v298
          %v557 = vpop.permute.xlu0 %556
          %vm559 = vcmask 130048
          %v560 = vsel %vm559, %v302, %v321
          %v561 = vsel %vm559, %v307, %v325
          %v562 = vsel %vm559, %v312, %v329
          %v563 = vsel %vm559, %v317, %v333
          %vm564 = vcmask 261120
          %v565 = vsel %vm564, %v560, %v337
          %v566 = vsel %vm564, %v561, %v341
          %v567 = vsel %vm564, %v562, %v345
          %v568 = vsel %vm564, %v563, %v349
          %vm569 = vcmask 392192
          %v570 = vsel %vm569, %v565, %v353
          %v571 = vsel %vm569, %v566, %v357
          %v572 = vsel %vm569, %v567, %v361
          %v573 = vsel %vm569, %v568, %v365
          %vm574 = vcmask 523264
          %v575 = vsel %vm574, %v570, %v369
          %v576 = vsel %vm574, %v571, %v373
          %v577 = vsel %vm574, %v572, %v377
          %v578 = vsel %vm574, %v573, %v381
          %vm579 = vcmask 654336
          %v580 = vsel %vm579, %v575, %v385
          %v581 = vsel %vm579, %v576, %v389
          %v582 = vsel %vm579, %v577, %v393
          %v583 = vsel %vm579, %v578, %v397
          %vm584 = vcmask 785408
          %v585 = vsel %vm584, %v580, %v401
          %v586 = vsel %vm584, %v581, %v405
          %v587 = vsel %vm584, %v582, %v409
          %v588 = vsel %vm584, %v583, %v413
          %vm589 = vcmask 916480
          %v590 = vsel %vm589, %v585, %v417
          %v591 = vsel %vm589, %v586, %v421
          %v592 = vsel %vm589, %v587, %v425
          %v593 = vsel %vm589, %v588, %v429
          %v594 = vsel %vm559, %v433, %v449
          %v595 = vsel %vm559, %v437, %v453
          %v596 = vsel %vm559, %v441, %v457
          %v597 = vsel %vm559, %v445, %v461
          %v598 = vsel %vm564, %v594, %v465
          %v599 = vsel %vm564, %v595, %v469
          %v600 = vsel %vm564, %v596, %v473
          %v601 = vsel %vm564, %v597, %v477
          %v602 = vsel %vm569, %v598, %v481
          %v603 = vsel %vm569, %v599, %v485
          %v604 = vsel %vm569, %v600, %v489
          %v605 = vsel %vm569, %v601, %v493
          %v606 = vsel %vm574, %v602, %v497
          %v607 = vsel %vm574, %v603, %v501
          %v608 = vsel %vm574, %v604, %v505
          %v609 = vsel %vm574, %v605, %v509
          %v610 = vsel %vm579, %v606, %v513
          %v611 = vsel %vm579, %v607, %v517
          %v612 = vsel %vm579, %v608, %v521
          %v613 = vsel %vm579, %v609, %v525
          %v614 = vsel %vm584, %v610, %v529
          %v615 = vsel %vm584, %v611, %v533
          %v616 = vsel %vm584, %v612, %v537
          %v617 = vsel %vm584, %v613, %v541
          %v618 = vsel %vm589, %v614, %v545
          %v619 = vsel %vm589, %v615, %v549
          %v620 = vsel %vm589, %v616, %v553
          %v621 = vsel %vm589, %v617, %v557
          %622 = vst [vmem:[%s135] sm:$0xff] %v590
          %623 = vst [vmem:[%s135 + $0x8] sm:$0xff] %v618
          %624 = vst [vmem:[%s135 + $0x10] sm:$0xff] %v591
          %625 = vst [vmem:[%s135 + $0x18] sm:$0xff] %v619
          %626 = vst [vmem:[%s135 + $0x20] sm:$0xff] %v592
          %627 = vst [vmem:[%s135 + $0x28] sm:$0xff] %v620
          %628 = vst [vmem:[%s135 + $0x30] sm:$0xff] %v593
          %629 = vst [vmem:[%s135 + $0x38] sm:$0xff] %v621
          %s630 = scalar_lea.vmem %s135, 64 [#allocation2]
          %631 = vst [vmem:[%s630] sm:$0xff] %v590
          %632 = vst [vmem:[%s630 + $0x8] sm:$0xff] %v618
          %633 = vst [vmem:[%s630 + $0x10] sm:$0xff] %v591
          %634 = vst [vmem:[%s630 + $0x18] sm:$0xff] %v619
          %635 = vst [vmem:[%s630 + $0x20] sm:$0xff] %v592
          %636 = vst [vmem:[%s630 + $0x28] sm:$0xff] %v620
          %637 = vst [vmem:[%s630 + $0x30] sm:$0xff] %v593
          %638 = vst [vmem:[%s630 + $0x38] sm:$0xff] %v621
        $region36: #{tpu_custom_call.1} parent=27 // pred_fallthru
          _
        %s639 = sand.u32 %s80, 1
        %s640 = scalar_lea.sflag [#allocation3], %s639
        %s641 = sand.u32 %s80, 1
        %s642 = smul.addr %s641, 128
        %s643 = scalar_lea.vmem [#allocation2], %s642
        // Predicated region
        $region37: #{tpu_custom_call.1} parent=27 // pred_check
          %p644 = pneg %p90
        $region38: #{tpu_custom_call.1} parent=27 // pred_check_branch
          %646 = sbr.rel (%p644) target = $region40
        $region39: #{tpu_custom_call.1} parent=27 // pred_region
          #allocation5 [shape = 'u32[6]{0}', space=smem, size = 0x18, scoped, tag = 'DMA stride descriptor']
          %s647 = smul.u32 2, %s20
          %s648 = smul.u32 4, %s21
          %s650 = ssub.s32 2048, 2048
          %651 = vsyncadd %s640, %s650
          %s652 = smul.addr %s648, 2
          %s653 = smul.addr %s647, 16
          %s654 = sadd.s32 %s652, %s653
          %s655 = smul.addr %s654, 128
          %s656 = scalar_lea.hbm %s2, %s655
          %s658 = sshll.u32 1, 14
          %s659 = sxor.u32 4294967295, %s658
          %s662 = sshll.u32 7, 18
          %s663 = sxor.u32 4294967295, %s662
          %s664 = sand.u32 0, %s663
          %s666 = sor.u32 %s664, 0
          %s667 = sshll.u32 %s643, 4
          %s668 = int_to_ptr.vmem [resolvable:$true] %s667
          %674 = sst [smem:[#allocation5]] 1024
          %s675 = scalar_lea.smem [#allocation5], 1
          %676 = sst [smem:[%s675]] 2048
          %s677 = scalar_lea.smem [#allocation5], 2
          %678 = sst [smem:[%s677]] 4
          %s679 = scalar_lea.smem [#allocation5], 3
          %680 = sst [smem:[%s679]] 256
          %s681 = scalar_lea.smem [#allocation5], 4
          %682 = sst [smem:[%s681]] 256
          %s683 = scalar_lea.smem [#allocation5], 5
          %684 = sst [smem:[%s683]] 16
          %686 = dma.general %s668, 2048, %s656, %s640, 131072, [#allocation5], %s666, 0
        $region40: #{tpu_custom_call.1} parent=27 // pred_fallthru
          _
      $region28: #{tpu_custom_call.1} parent=5 // pred_fallthru
        _
      %p687 = scmp.le.s32.totalorder 2, %s11
      // Predicated region
      $region41: #{tpu_custom_call.1} parent=5 // pred_check
        %p688 = pneg %p687
      $region42: #{tpu_custom_call.1} parent=5 // pred_check_branch
        %690 = sbr.rel (%p688) target = $region44
      $region43: #{tpu_custom_call.1} parent=5 // pred_region
        %s691 = ssub.s32 %s11, 2
        // Predicated region
        $region45: #{tpu_custom_call.1} parent=43 // pred_check
          %p692 = pneg %p96
        $region46: #{tpu_custom_call.1} parent=43 // pred_check_branch
          %694 = sbr.rel (%p692) target = $region48
        $region47: #{tpu_custom_call.1} parent=43 // pred_region
          %s695 = sand.u32 %s81, 1
          %s696 = scalar_lea.sflag [#allocation3], %s695
          %s697 = sand.u32 %s81, 1
          %s698 = smul.addr %s697, 128
          %s699 = scalar_lea.vmem [#allocation2], %s698
          %700 = dma.done %s696, 2048
        $region48: #{tpu_custom_call.1} parent=43 // pred_fallthru
          _
      $region44: #{tpu_custom_call.1} parent=5 // pred_fallthru
        _
    $region6: #{tpu_custom_call.1} parent=1 // loop_footer
      %s15 = sadd.s32 1, %s11
    $region7: #{tpu_custom_call.1} parent=1 // loop_footer_branch
      %10 = sbr.rel target = $region3
    $region8: #{tpu_custom_call.1} parent=1 // loop_exit
      _
    %701 = vsyncpa [#allocation3], 1
    %s702 = scalar_lea.sflag [#allocation3], 1
    %703 = vsyncpa %s702, 1

</llo_original>
